<compile_context>
chip_gen: v7x
topology: tpu7x:2x2x1
jax: 0.10.0
libtpu: 0.0.40
codegen_flags: <defaults>
</compile_context>

<pallas_src>
import functools

import jax
import jax.numpy as jnp
from jax.experimental import pallas as pl
from jax.experimental.pallas import tpu as pltpu


def _dice_rows_kernel(pred_ref, targ_ref, dice_ref, inter_acc, sum_acc, *,
                      eps, length, tl):
    """Process one (TR, TL) tile; accumulate per-row sums across the length axis."""
    k = pl.program_id(1)

    @pl.when(k == 0)
    def _():
        inter_acc[...] = jnp.zeros_like(inter_acc)
        sum_acc[...] = jnp.zeros_like(sum_acc)

    # Upcast per tile inside the kernel (keeps the HBM stream narrow).
    p = jax.nn.sigmoid(pred_ref[...].astype(jnp.float32))
    t = targ_ref[...].astype(jnp.float32)

    if length % tl != 0:
        # Ragged last length-tile: mask out-of-bounds columns so padded
        # garbage never contaminates the row sums.
        col = k * tl + jax.lax.broadcasted_iota(jnp.int32, p.shape, 1)
        valid = col < length
        p = jnp.where(valid, p, 0.0)
        t = jnp.where(valid, t, 0.0)

    inter_acc[...] += jnp.sum(p * t, axis=-1, keepdims=True)
    # Single fused row-sum (one last-axis reduction instead of two; the
    # elementwise add rides the free VPU slots of a mem-bound kernel).
    sum_acc[...] += jnp.sum(p + t, axis=-1, keepdims=True)

    @pl.when(k == pl.num_programs(1) - 1)
    def _():
        inter = inter_acc[...]
        sets_sum = sum_acc[...]
        # PyTorch: if sets_sum == 0: sets_sum = 2 * inter
        sets_sum = jnp.where(sets_sum == 0.0, 2.0 * inter, sets_sum)
        dice_ref[...] = (2.0 * inter + eps) / (sets_sum + eps)


def my_dice_loss(pred, target, *, use_sigmoid=True, loss_weight=1.0,
                 ignore_index=-100, eps=1e-3):
    """JAX/Pallas equivalent of MyDiceLoss.forward (ignore_index < 0 path)."""
    assert pred.shape == target.shape, "use same-shape pred/target (no unsqueeze path)"
    assert use_sigmoid, "only the sigmoid path is implemented"
    # TODO(synk): ignore_index >= 0 masking path (boolean gather) not implemented;
    # the module/forward default is -100 so masking is disabled, matching PyTorch.
    assert ignore_index < 0

    n, c = pred.shape[0], pred.shape[1]
    rows = n * c
    length = 1
    for d in pred.shape[2:]:
        length *= d

    # Keep native dtypes on the wire; the kernel upcasts per tile.
    pred2 = pred.reshape(rows, length)
    targ2 = target.reshape(rows, length)
    itemsize = jnp.dtype(pred2.dtype).itemsize

    # --- Tile selection -----------------------------------------------------
    # Length tiles: lane-dense (multiple of 128) or the full dimension.
    TL = length if length <= 8192 else 8192            # 8192 is a multiple of 128
    # Row tiles: target ~2 MiB per input buffer (x2 inputs x2 pipeline buffers
    # = ~8 MiB double-buffered VMEM), aligned to the native sublane packing
    # (8 rows for f32, 16 for bf16, 32 for int8/fp8).
    row_align = max(8, 32 // itemsize)
    max_tr = max(row_align, (2 * 1024 * 1024) // max(1, TL * itemsize))
    max_tr = max(row_align, (max_tr // row_align) * row_align)
    TR = rows if rows <= max_tr else max_tr             # full dim, or aligned tile

    grid = (pl.cdiv(rows, TR), pl.cdiv(length, TL))     # reduction (length) axis last

    kernel = functools.partial(_dice_rows_kernel, eps=float(eps),
                               length=length, tl=TL)

    in_bytes = (pred2.size * pred2.dtype.itemsize
                + targ2.size * targ2.dtype.itemsize)
    cost = pl.CostEstimate(flops=3 * rows * length,
                           transcendentals=rows * length,
                           bytes_accessed=in_bytes + rows * 4)

    dice_per_row = pl.pallas_call(
        kernel,
        out_shape=jax.ShapeDtypeStruct((rows, 1), jnp.float32),
        grid=grid,
        in_specs=[
            pl.BlockSpec((TR, TL), lambda i, k: (i, k)),
            pl.BlockSpec((TR, TL), lambda i, k: (i, k)),
        ],
        # Same row-block across the length axis -> accumulator pattern;
        # written once, at the last reduction step, flushed on block change.
        out_specs=pl.BlockSpec((TR, 1), lambda i, k: (i, 0)),
        scratch_shapes=[
            pltpu.VMEM((TR, 1), jnp.float32),   # intersection accumulator
            pltpu.VMEM((TR, 1), jnp.float32),   # sum(p)+sum(t) accumulator
        ],
        compiler_params=pltpu.CompilerParams(
            dimension_semantics=("parallel", "arbitrary")),
        cost_estimate=cost,
    )(pred2, targ2)

    # multiclass_dice_coeff: mean over batch per channel, then mean over channels.
    # All (batch, channel) slices have equal weight -> flat mean matches exactly.
    dice = jnp.mean(dice_per_row)
    return loss_weight * (1.0 - dice)


if __name__ == "__main__":
    key = jax.random.PRNGKey(0)
    kp, kt = jax.random.split(key)

    def ref_loss(pred, target, eps=1e-3, loss_weight=1.0):
        n, c = pred.shape[0], pred.shape[1]
        p = jax.nn.sigmoid(pred.astype(jnp.float32)).reshape(n * c, -1)
        t = target.astype(jnp.float32).reshape(n * c, -1)
        inter = jnp.sum(p * t, axis=-1)
        ss = jnp.sum(p, axis=-1) + jnp.sum(t, axis=-1)
        ss = jnp.where(ss == 0.0, 2.0 * inter, ss)
        return loss_weight * (1.0 - jnp.mean((2.0 * inter + eps) / (ss + eps)))

    # Case 1: small f32 inputs (single length tile per row block).
    N, C, H, W = 2, 4, 16, 16
    pred = jax.random.normal(kp, (N, C, H, W), dtype=jnp.float32)
    target = (jax.random.uniform(kt, (N, C, H, W)) > 0.5).astype(jnp.float32)
    loss = my_dice_loss(pred, target, use_sigmoid=True, loss_weight=1.0,
                        ignore_index=-100, eps=1e-3)
    jax.block_until_ready(loss)
    ref = ref_loss(pred, target, eps=1e-3)
    assert jnp.allclose(loss, ref, atol=1e-5, rtol=1e-5), (loss, ref)

    # Case 2: bf16 inputs with a ragged length axis (length = 9216 > 8192),
    # exercising the narrow-dtype HBM stream, the multi-step reduction and the
    # in-kernel tail mask.
    H2 = W2 = 96
    pred_b = jax.random.normal(kp, (N, C, H2, W2), dtype=jnp.bfloat16)
    target_b = (jax.random.uniform(kt, (N, C, H2, W2)) > 0.5).astype(jnp.bfloat16)
    loss_b = my_dice_loss(pred_b, target_b, use_sigmoid=True, loss_weight=1.0,
                          ignore_index=-100, eps=1e-3)
    jax.block_until_ready(loss_b)
    ref_b = ref_loss(pred_b, target_b, eps=1e-3)
    assert jnp.allclose(loss_b, ref_b, atol=2e-4, rtol=2e-4), (loss_b, ref_b)

    print("KERNEL_OK")
</pallas_src>

<mosaic_0001>
module attributes {stable_mosaic.version = 11 : i64} {
  func.func @_dice_rows_kernel(%arg0: i32, %arg1: i32, %arg2: memref<8x256xf32, #tpu.memory_space<vmem>>, %arg3: memref<8x256xf32, #tpu.memory_space<vmem>>, %arg4: memref<8x1xf32, #tpu.memory_space<vmem>>, %arg5: memref<8x1xf32, #tpu.memory_space<vmem>>, %arg6: memref<8x1xf32, #tpu.memory_space<vmem>>) attributes {dimension_semantics = [#tpu.dimension_semantics<parallel>, #tpu.dimension_semantics<arbitrary>], iteration_bounds = array<i64: 1, 1>, scalar_prefetch = 0 : i64, scratch_operands = 2 : i64, tpu.core_type = #tpu.core_type<tc>, window_params = [{transform_indices = @transform_0, window_bounds = array<i64: 8, 256>}, {transform_indices = @transform_1, window_bounds = array<i64: 8, 256>}, {transform_indices = @transform_2, window_bounds = array<i64: 8, 1>}]} {
    %c0_i32 = arith.constant 0 : i32
    %0 = arith.cmpi eq, %arg1, %c0_i32 : i32
    %1 = arith.extui %0 : i1 to i32
    %c0_i32_0 = arith.constant 0 : i32
    %2 = arith.cmpi ne, %1, %c0_i32_0 : i32
    scf.if %2 {
      %cst_16 = arith.constant 0.000000e+00 : f32
      %25 = vector.broadcast %cst_16 : f32 to vector<8x1xf32>
      %c0_17 = arith.constant 0 : index
      %c0_18 = arith.constant 0 : index
      %26 = vector.load %arg5[%c0_17, %c0_18] : memref<8x1xf32, #tpu.memory_space<vmem>>, vector<8x1xf32>
      tpu.vector_store %arg5[%c0_17, %c0_18], %25 {strides = array<i32>} : memref<8x1xf32, #tpu.memory_space<vmem>>, vector<8x1xf32>,
      %cst_19 = arith.constant 0.000000e+00 : f32
      %27 = vector.broadcast %cst_19 : f32 to vector<8x1xf32>
      %c0_20 = arith.constant 0 : index
      %c0_21 = arith.constant 0 : index
      %28 = vector.load %arg6[%c0_20, %c0_21] : memref<8x1xf32, #tpu.memory_space<vmem>>, vector<8x1xf32>
      tpu.vector_store %arg6[%c0_20, %c0_21], %27 {strides = array<i32>} : memref<8x1xf32, #tpu.memory_space<vmem>>, vector<8x1xf32>,
    } else {
    }
    %c0 = arith.constant 0 : index
    %c0_1 = arith.constant 0 : index
    %3 = vector.load %arg2[%c0, %c0_1] : memref<8x256xf32, #tpu.memory_space<vmem>>, vector<8x256xf32>
    %4 = arith.negf %3 : vector<8x256xf32>
    %5 = math.exp %4 : vector<8x256xf32>
    %cst = arith.constant 1.000000e+00 : f32
    %6 = vector.broadcast %cst : f32 to vector<8x256xf32>
    %7 = arith.addf %6, %5 : vector<8x256xf32>
    %8 = arith.divf %6, %7 : vector<8x256xf32>
    %c0_2 = arith.constant 0 : index
    %c0_3 = arith.constant 0 : index
    %9 = vector.load %arg3[%c0_2, %c0_3] : memref<8x256xf32, #tpu.memory_space<vmem>>, vector<8x256xf32>
    %c0_4 = arith.constant 0 : index
    %c0_5 = arith.constant 0 : index
    %10 = vector.load %arg5[%c0_4, %c0_5] : memref<8x1xf32, #tpu.memory_space<vmem>>, vector<8x1xf32>
    %11 = arith.mulf %8, %9 : vector<8x256xf32>
    %cst_6 = arith.constant dense<0.000000e+00> : vector<8xf32>
    %12 = vector.multi_reduction <add>, %11, %cst_6 [1] : vector<8x256xf32> to vector<8xf32>
    %13 = vector.shape_cast %12 : vector<8xf32> to vector<8x1xf32>
    %14 = arith.addf %10, %13 : vector<8x1xf32>
    %c0_7 = arith.constant 0 : index
    %c0_8 = arith.constant 0 : index
    %15 = vector.load %arg5[%c0_7, %c0_8] : memref<8x1xf32, #tpu.memory_space<vmem>>, vector<8x1xf32>
    tpu.vector_store %arg5[%c0_7, %c0_8], %14 {strides = array<i32>} : memref<8x1xf32, #tpu.memory_space<vmem>>, vector<8x1xf32>,
    %c0_9 = arith.constant 0 : index
    %c0_10 = arith.constant 0 : index
    %16 = vector.load %arg6[%c0_9, %c0_10] : memref<8x1xf32, #tpu.memory_space<vmem>>, vector<8x1xf32>
    %17 = arith.addf %8, %9 : vector<8x256xf32>
    %cst_11 = arith.constant dense<0.000000e+00> : vector<8xf32>
    %18 = vector.multi_reduction <add>, %17, %cst_11 [1] : vector<8x256xf32> to vector<8xf32>
    %19 = vector.shape_cast %18 : vector<8xf32> to vector<8x1xf32>
    %20 = arith.addf %16, %19 : vector<8x1xf32>
    %c0_12 = arith.constant 0 : index
    %c0_13 = arith.constant 0 : index
    %21 = vector.load %arg6[%c0_12, %c0_13] : memref<8x1xf32, #tpu.memory_space<vmem>>, vector<8x1xf32>
    tpu.vector_store %arg6[%c0_12, %c0_13], %20 {strides = array<i32>} : memref<8x1xf32, #tpu.memory_space<vmem>>, vector<8x1xf32>,
    %c0_i32_14 = arith.constant 0 : i32
    %22 = arith.cmpi eq, %arg1, %c0_i32_14 : i32
    %23 = arith.extui %22 : i1 to i32
    %c0_i32_15 = arith.constant 0 : i32
    %24 = arith.cmpi ne, %23, %c0_i32_15 : i32
    scf.if %24 {
      %c0_16 = arith.constant 0 : index
      %c0_17 = arith.constant 0 : index
      %25 = vector.load %arg5[%c0_16, %c0_17] : memref<8x1xf32, #tpu.memory_space<vmem>>, vector<8x1xf32>
      %c0_18 = arith.constant 0 : index
      %c0_19 = arith.constant 0 : index
      %26 = vector.load %arg6[%c0_18, %c0_19] : memref<8x1xf32, #tpu.memory_space<vmem>>, vector<8x1xf32>
      %cst_20 = arith.constant 0.000000e+00 : f32
      %27 = vector.broadcast %cst_20 : f32 to vector<8x1xf32>
      %28 = arith.cmpf oeq, %26, %27 : vector<8x1xf32>
      %cst_21 = arith.constant 2.000000e+00 : f32
      %29 = vector.broadcast %cst_21 : f32 to vector<8x1xf32>
      %30 = arith.mulf %29, %25 : vector<8x1xf32>
      %31 = arith.select %28, %30, %26 : vector<8x1xi1>, vector<8x1xf32>
      %cst_22 = arith.constant 2.000000e+00 : f32
      %32 = vector.broadcast %cst_22 : f32 to vector<8x1xf32>
      %33 = arith.mulf %32, %25 : vector<8x1xf32>
      %cst_23 = arith.constant 1.000000e-03 : f32
      %34 = vector.broadcast %cst_23 : f32 to vector<8x1xf32>
      %35 = arith.addf %33, %34 : vector<8x1xf32>
      %cst_24 = arith.constant 1.000000e-03 : f32
      %36 = vector.broadcast %cst_24 : f32 to vector<8x1xf32>
      %37 = arith.addf %31, %36 : vector<8x1xf32>
      %38 = arith.divf %35, %37 : vector<8x1xf32>
      %c0_25 = arith.constant 0 : index
      %c0_26 = arith.constant 0 : index
      %39 = vector.load %arg4[%c0_25, %c0_26] : memref<8x1xf32, #tpu.memory_space<vmem>>, vector<8x1xf32>
      tpu.vector_store %arg4[%c0_25, %c0_26], %38 {strides = array<i32>} : memref<8x1xf32, #tpu.memory_space<vmem>>, vector<8x1xf32>,
    } else {
    }
    return
  }
  func.func @transform_0(%arg0: i32, %arg1: i32) -> (i32, i32) {
    %c0_i32 = arith.constant 0 : i32
    return %arg0, %arg1 : i32, i32
  }
  func.func @transform_1(%arg0: i32, %arg1: i32) -> (i32, i32) {
    %c0_i32 = arith.constant 0 : i32
    return %arg0, %arg1 : i32, i32
  }
  func.func @transform_2(%arg0: i32, %arg1: i32) -> (i32, i32) {
    %c0_i32 = arith.constant 0 : i32
    %c0_i32_0 = arith.constant 0 : i32
    return %arg0, %c0_i32 : i32, i32
  }
}

</mosaic_0001>

<llo_original>
// kernel: tpu_custom_call.1
$region0: #{tpu_custom_call.1}
  #allocation0 [shape = 'u32[]', space=smem, size = 0x4, offset = 0x4, fixed_abs, tag = 'smem constant byte address 0x4 - core index']
  #allocation1 [shape = 'u32[144,128]{1,0:T(1,128)}', space=vmem, size = 0x12000, scoped, tag = 'internal scratch']
  #allocation2 [shape = 'f32[8,1]{1,0:T(8,128)}', space=vmem, size = 0x1000, scoped, tag = 'scratch operand']
  #allocation3 [shape = 'f32[8,1]{1,0:T(8,128)}', space=vmem, size = 0x1000, scoped, tag = 'scratch operand']
  %s0 = inlined_call_operand.hbm [shape: f32[8,256], index: 0, kind: input, shape index: {}]
  %s1 = inlined_call_operand.hbm [shape: f32[8,256], index: 1, kind: input, shape index: {}]
  %s2 = inlined_call_operand.vmem [shape: f32[8,1], index: 2, kind: output, shape index: {}]
  %s3 = sld [smem:[#allocation0]]
  $region34: #{tpu_custom_call.1} parent=0
    _
  %s5 = ssub.s32 1, %s3
  %s6 = scalar_select 0, %s5, %s3
  $region1: #{tpu_custom_call.1} parent=0
    #allocation4 [shape = 'u8[8192]{0}', space=vmem, size = 0x2000, scoped, tag = 'input window, operand 0, single buffered']
    #allocation5 [shape = 's32[1]{0}', space=sflag, size = 0x4, scoped, tag = 'scoped memory for tpu_custom_call.1']
    #allocation6 [shape = 'u8[8192]{0}', space=vmem, size = 0x2000, scoped, tag = 'input window, operand 1, single buffered']
    #allocation7 [shape = 's32[1]{0}', space=sflag, size = 0x4, scoped, tag = 'scoped memory for tpu_custom_call.1']
    %7 = vsyncpa [#allocation5], 0
    %8 = vsyncpa [#allocation7], 0
    // Predicated region
    $region2: #{tpu_custom_call.1} parent=1 // pred_check
      _
    $region3: #{tpu_custom_call.1} parent=1 // pred_check_branch
      %10 = sbr.rel (0) target = $region5
    $region4: #{tpu_custom_call.1} parent=1 // pred_region
      %s12 = ssub.s32 256, 256
      %13 = vsyncadd [#allocation5], %s12
      %s15 = sshll.u32 [#allocation4], 4
      %s16 = int_to_ptr.vmem [resolvable:$true] %s15
      %18 = dma.hbm_to_vmem [thread:$0]  %s0, 256, %s16, [#allocation5]
    $region5: #{tpu_custom_call.1} parent=1 // pred_fallthru
      _
    // Predicated region
    $region6: #{tpu_custom_call.1} parent=1 // pred_check
      _
    $region7: #{tpu_custom_call.1} parent=1 // pred_check_branch
      %20 = sbr.rel (0) target = $region9
    $region8: #{tpu_custom_call.1} parent=1 // pred_region
      %s22 = ssub.s32 256, 256
      %23 = vsyncadd [#allocation7], %s22
      %s25 = sshll.u32 [#allocation6], 4
      %s26 = int_to_ptr.vmem [resolvable:$true] %s25
      %28 = dma.hbm_to_vmem [thread:$0]  %s1, 256, %s26, [#allocation7]
    $region9: #{tpu_custom_call.1} parent=1 // pred_fallthru
      _
    // Predicated region
    $region10: #{tpu_custom_call.1} parent=1 // pred_check
      _
    $region11: #{tpu_custom_call.1} parent=1 // pred_check_branch
      %30 = sbr.rel (0) target = $region13
    $region12: #{tpu_custom_call.1} parent=1 // pred_region
      %31 = dma.done [#allocation5], 256
    $region13: #{tpu_custom_call.1} parent=1 // pred_fallthru
      _
    // Predicated region
    $region14: #{tpu_custom_call.1} parent=1 // pred_check
      _
    $region15: #{tpu_custom_call.1} parent=1 // pred_check_branch
      %33 = sbr.rel (0) target = $region17
    $region16: #{tpu_custom_call.1} parent=1 // pred_region
      %34 = dma.done [#allocation7], 256
    $region17: #{tpu_custom_call.1} parent=1 // pred_fallthru
      _
    %p35 = scmp.eq.s32.totalorder 0, 0
    // Predicated region
    $region18: #{tpu_custom_call.1} parent=1 // pred_check
      %p36 = pneg %p35
    $region19: #{tpu_custom_call.1} parent=1 // pred_check_branch
      %38 = sbr.rel (%p36) target = $region21
    $region20: #{tpu_custom_call.1} parent=1 // pred_region
      %vm39 = vcmask 7168
      %40 = vst.msk [vmem:[#allocation2] sm:$0xff] %vm39, 0.0
      %41 = vst.msk [vmem:[#allocation3] sm:$0xff] %vm39, 0.0
    $region21: #{tpu_custom_call.1} parent=1 // pred_fallthru
      _
    %v42 = vld [vmem:[#allocation4] sm:$0xff]
    %v43 = vld [vmem:[#allocation4 + $0x8] sm:$0xff]
    %v44 = vxor.u32 %v42, 2147483648
    %v45 = vxor.u32 %v43, 2147483648
    %v46 = vmul.f32 %v44, 1.442695
    %v47 = vpow.pop %v46
    %v48 = vmul.f32 %v45, 1.442695
    %v49 = vpow.pop %v48
    %v50 = vadd.f32 %v47, 1.0
    %v51 = vadd.f32 %v49, 1.0
    %v52 = vrcp.pop %v50
    %v53 = vmul.f32 1.0, %v52
    %v54 = vrcp.pop %v51
    %v55 = vmul.f32 1.0, %v54
    %v56 = vld [vmem:[#allocation6] sm:$0xff]
    %v57 = vld [vmem:[#allocation6 + $0x8] sm:$0xff]
    %v58 = vld [vmem:[#allocation2] sm:$0xff]
    %v59 = vmul.f32 %v53, %v56
    %v60 = vmul.f32 %v55, %v57
    %v61 = vadd.f32 %v59, %v60
    %62 = vadd.xlane.f32.xlu0 %v61
    %v63 = vpop.xlane.xlu0 %62
    %v64 = vadd.f32 %v58, %v63
    %vm65 = vcmask 7168
    %66 = vst.msk [vmem:[#allocation2] sm:$0xff] %vm65, %v64
    %v67 = vld [vmem:[#allocation3] sm:$0xff]
    %v68 = vadd.f32 %v53, %v56
    %v69 = vadd.f32 %v55, %v57
    %v70 = vadd.f32 %v68, %v69
    %71 = vadd.xlane.f32.xlu0 %v70
    %v72 = vpop.xlane.xlu0 %71
    %v73 = vadd.f32 %v67, %v72
    %74 = vst.msk [vmem:[#allocation3] sm:$0xff] %vm65, %v73
    // Predicated region
    $region22: #{tpu_custom_call.1} parent=1 // pred_check
      %p75 = pneg %p35
    $region23: #{tpu_custom_call.1} parent=1 // pred_check_branch
      %77 = sbr.rel (%p75) target = $region25
    $region24: #{tpu_custom_call.1} parent=1 // pred_region
      %v78 = vld [vmem:[#allocation2] sm:$0xff]
      %v79 = vld [vmem:[#allocation3] sm:$0xff]
      %vm80 = vcmp.eq.f32.partialorder %v79, 0.0
      %v81 = vmul.f32 %v78, 2.0
      %v82 = vsel %vm80, %v81, %v79
      %v83 = vadd.f32 %v81, 0.001
      %v84 = vadd.f32 %v82, 0.001
      %v85 = vrcp.pop %v84
      %v86 = vmul.f32 %v83, %v85
      %87 = vst.msk [vmem:[%s2] sm:$0xff] %vm65, %v86
    $region25: #{tpu_custom_call.1} parent=1 // pred_fallthru
      _
    // Predicated region
    $region26: #{tpu_custom_call.1} parent=1 // pred_check
      _
    $region27: #{tpu_custom_call.1} parent=1 // pred_check_branch
      %89 = sbr.rel (0) target = $region29
    $region28: #{tpu_custom_call.1} parent=1 // pred_region
      _
    $region29: #{tpu_custom_call.1} parent=1 // pred_fallthru
      _
    // Predicated region
    $region30: #{tpu_custom_call.1} parent=1 // pred_check
      _
    $region31: #{tpu_custom_call.1} parent=1 // pred_check_branch
      %91 = sbr.rel (0) target = $region33
    $region32: #{tpu_custom_call.1} parent=1 // pred_region
      _
    $region33: #{tpu_custom_call.1} parent=1 // pred_fallthru
      _
    %92 = vsyncpa [#allocation5], 1
    %93 = vsyncpa [#allocation7], 1

</llo_original>
